<compile_context>
chip_gen: v7x
topology: tpu7x:2x2x1
jax: 0.10.0
libtpu: 0.0.40
codegen_flags: <defaults>
</compile_context>

<pallas_src>
import functools

import jax
import jax.numpy as jnp
from jax import lax
from jax.experimental import pallas as pl
from jax.experimental.pallas import tpu as pltpu

LN_EPS = 1e-5                       # torch.nn.LayerNorm default
_VMEM_LIMIT = 48 * 1024 * 1024      # explicit scoped-VMEM budget (v5e/v6e/v7x safe)


# --------------------------------------------------------------------------------------
# Kernel 1: fused Q/K/V projection   out = x @ [Wq^T*s | Wk^T | Wv^T] + [bq*s | 0 | bv]
# --------------------------------------------------------------------------------------
def _qkv_proj_kernel(x_ref, w_ref, b_ref, o_ref):
    acc = jnp.dot(x_ref[...], w_ref[...], preferred_element_type=jnp.float32)
    o_ref[...] = (acc + b_ref[...].astype(jnp.float32)).astype(o_ref.dtype)


# --------------------------------------------------------------------------------------
# Kernel 2: flash attention (online softmax) per (batch*head)
# --------------------------------------------------------------------------------------
def _flash_attn_kernel(*refs, has_bias, kv_len, block_k):
    if has_bias:
        q_ref, k_ref, v_ref, bias_ref, o_ref, m_sc, l_sc, acc_sc = refs
    else:
        q_ref, k_ref, v_ref, o_ref, m_sc, l_sc, acc_sc = refs
        bias_ref = None
    ki = pl.program_id(2)

    @pl.when(ki == 0)
    def _init():
        m_sc[...] = jnp.full_like(m_sc, -jnp.inf)
        l_sc[...] = jnp.zeros_like(l_sc)
        acc_sc[...] = jnp.zeros_like(acc_sc)

    # Keep q/k/v in the input dtype: bf16 inputs run bf16 on the MXU, accumulation is f32.
    q = q_ref[0, 0]                                               # (tq, Dh), pre-scaled
    k = k_ref[0, 0]                                               # (tk, Dh)
    v = v_ref[0, 0]                                               # (tk, Dh)
    s = lax.dot_general(q, k, (((1,), (1,)), ((), ())),
                        preferred_element_type=jnp.float32)       # (tq, tk) f32
    if bias_ref is not None:
        s = s + bias_ref[0].astype(jnp.float32)

    if kv_len % block_k != 0:
        # Ragged last kv tile: mask out-of-range score columns and zero the over-fetched
        # V rows (NaN-safe; garbage VMEM bits could otherwise propagate via 0 * NaN).
        col = ki * block_k + lax.broadcasted_iota(jnp.int32, s.shape, 1)
        s = jnp.where(col < kv_len, s, -1e30)
        row = ki * block_k + lax.broadcasted_iota(jnp.int32, v.shape, 0)
        v = jnp.where(row < kv_len, v, jnp.zeros_like(v))

    m_prev = m_sc[0]                                              # (tq, 1)
    m_new = jnp.maximum(m_prev, s.max(axis=-1, keepdims=True))
    alpha = jnp.exp(m_prev - m_new)
    p = jnp.exp(s - m_new)
    l_sc[0] = alpha * l_sc[0] + p.sum(axis=-1, keepdims=True)
    acc_sc[0] = alpha * acc_sc[0] + jnp.dot(p.astype(v.dtype), v,
                                            preferred_element_type=jnp.float32)
    m_sc[0] = m_new

    @pl.when(ki == pl.num_programs(2) - 1)
    def _finalize():
        o_ref[0] = (acc_sc[0] * pl.reciprocal(l_sc[0], approx=True)).astype(o_ref.dtype)


# --------------------------------------------------------------------------------------
# Kernel 3: LayerNorm(embed_dim) fused with out_proj (LN computed once per row tile)
# --------------------------------------------------------------------------------------
def _ln_out_proj_kernel(x_ref, g_ref, bln_ref, w_ref, b_ref, o_ref, y_sc):
    @pl.when(pl.program_id(1) == 0)
    def _layernorm():
        x = x_ref[...].astype(jnp.float32)                        # (tr, C)
        mean = jnp.mean(x, axis=-1, keepdims=True)
        xc = x - mean
        var = jnp.mean(xc * xc, axis=-1, keepdims=True)           # biased var (torch LN)
        y = xc * lax.rsqrt(var + LN_EPS)
        y = y * g_ref[...].astype(jnp.float32) + bln_ref[...].astype(jnp.float32)
        y_sc[...] = y.astype(y_sc.dtype)

    acc = jnp.dot(y_sc[...], w_ref[...], preferred_element_type=jnp.float32)
    o_ref[...] = (acc + b_ref[...].astype(jnp.float32)).astype(o_ref.dtype)


# --------------------------------------------------------------------------------------
# Wrapper
# --------------------------------------------------------------------------------------
@functools.partial(jax.jit,
                   static_argnames=("num_heads", "block_q", "block_k",
                                    "block_rows", "block_cols"))
def multihead_attention(query, wq, bq, wk, wv, bv, ln_g, ln_b, wo, bo,
                        attn_bias=None, *, num_heads,
                        block_q=256, block_k=256, block_rows=256, block_cols=512):
    """query: (L, B, C). Linear weights follow torch convention: (out_features, in_features).
    attn_bias: None, (L, L), (1, L, L) or (B*num_heads, L, L) (broadcast via index_map)."""
    L, B, C = query.shape
    H = num_heads
    Dh = C // H
    assert Dh * H == C, "embed_dim must be divisible by num_heads"
    scaling = Dh ** -0.5
    BH = B * H
    R = L * B
    dt = query.dtype

    # ---------------- fused QKV projection ----------------
    w_qkv = jnp.concatenate([wq.T * scaling, wk.T, wv.T], axis=1).astype(dt)       # (C, 3C)
    b_qkv = jnp.concatenate([bq * scaling, jnp.zeros_like(bq), bv])[None].astype(dt)
    x2d = query.reshape(R, C)

    tr = min(block_rows, R)
    tn = min(block_cols, 3 * C)
    n_row = pl.cdiv(R, tr)
    n_col = pl.cdiv(3 * C, tn)
    # Column tiles OUTER: the (C, tn) weight block index is constant across the inner row
    # sweep, so Pallas keeps it resident instead of re-DMAing it per row tile.
    qkv = pl.pallas_call(
        _qkv_proj_kernel,
        out_shape=jax.ShapeDtypeStruct((R, 3 * C), dt),
        grid_spec=pltpu.PrefetchScalarGridSpec(
            num_scalar_prefetch=0,
            grid=(n_col, n_row),
            in_specs=[
                pl.BlockSpec((tr, C), lambda j, i: (i, 0)),
                pl.BlockSpec((C, tn), lambda j, i: (0, j)),
                pl.BlockSpec((1, tn), lambda j, i: (0, j)),
            ],
            out_specs=pl.BlockSpec((tr, tn), lambda j, i: (i, j)),
        ),
        compiler_params=pltpu.CompilerParams(
            dimension_semantics=("parallel", "parallel"),
            vmem_limit_bytes=_VMEM_LIMIT),
    )(x2d, w_qkv, b_qkv)

    # (L*B, 3C) -> (3, B*H, L, Dh); matches torch .view(L, B*H, Dh).transpose(0, 1).
    qkv = jnp.transpose(qkv.reshape(L, B, 3, H, Dh), (2, 1, 3, 0, 4)).reshape(3, BH, L, Dh)

    # ---------------- flash attention ----------------
    tq = min(block_q, L)
    tk = min(block_k, L)
    has_bias = attn_bias is not None

    # q/k/v are three views into the same (3, BH, L, Dh) array (no extra slices/copies).
    args = [qkv, qkv, qkv]
    in_specs = [
        pl.BlockSpec((1, 1, tq, Dh), lambda b, qi, ki: (0, b, qi, 0)),
        pl.BlockSpec((1, 1, tk, Dh), lambda b, qi, ki: (1, b, ki, 0)),
        pl.BlockSpec((1, 1, tk, Dh), lambda b, qi, ki: (2, b, ki, 0)),
    ]
    if has_bias:
        bias = attn_bias
        if bias.ndim == 2:
            bias = bias[None]
        assert bias.ndim == 3 and bias.shape[-2:] == (L, L), "attn_bias must broadcast to (B*H, L, L)"
        assert bias.shape[0] in (1, BH), "attn_bias leading dim must be 1 or B*num_heads"
        bias = bias.astype(dt)   # stream bias in the activation dtype (halves HBM bytes for bf16)
        if bias.shape[0] == 1:
            bias_map = lambda b, qi, ki: (0, qi, ki)    # broadcast via index_map, no materialization
        else:
            bias_map = lambda b, qi, ki: (b, qi, ki)
        args.append(bias)
        in_specs.append(pl.BlockSpec((1, tq, tk), bias_map))

    attn = pl.pallas_call(
        functools.partial(_flash_attn_kernel, has_bias=has_bias, kv_len=L, block_k=tk),
        out_shape=jax.ShapeDtypeStruct((BH, L, Dh), dt),
        grid_spec=pltpu.PrefetchScalarGridSpec(
            num_scalar_prefetch=0,
            grid=(BH, pl.cdiv(L, tq), pl.cdiv(L, tk)),
            in_specs=in_specs,
            out_specs=pl.BlockSpec((1, tq, Dh), lambda b, qi, ki: (b, qi, 0)),
            scratch_shapes=[
                pltpu.VMEM((1, tq, 1), jnp.float32),    # running max
                pltpu.VMEM((1, tq, 1), jnp.float32),    # running denominator
                pltpu.VMEM((1, tq, Dh), jnp.float32),   # output accumulator
            ],
        ),
        compiler_params=pltpu.CompilerParams(
            dimension_semantics=("parallel", "parallel", "arbitrary"),
            vmem_limit_bytes=_VMEM_LIMIT),
    )(*args)

    # (B*H, L, Dh) -> (L*B, C); matches torch .transpose(0, 1).view(L, B, C).
    attn2d = jnp.transpose(attn.reshape(B, H, L, Dh), (2, 0, 1, 3)).reshape(R, C)

    # ---------------- fused LayerNorm + out_proj ----------------
    tn2 = min(block_cols, C)
    n_col2 = pl.cdiv(C, tn2)
    out2d = pl.pallas_call(
        _ln_out_proj_kernel,
        out_shape=jax.ShapeDtypeStruct((R, C), dt),
        grid_spec=pltpu.PrefetchScalarGridSpec(
            num_scalar_prefetch=0,
            # Rows OUTER so the LayerNorm (computed at column tile j == 0 into VMEM
            # scratch) is reused for every output-column tile of that row block; the
            # (tr, C) activation block is also resident across the inner j sweep.
            grid=(n_row, n_col2),
            in_specs=[
                pl.BlockSpec((tr, C), lambda i, j: (i, 0)),
                pl.BlockSpec((1, C), lambda i, j: (0, 0)),
                pl.BlockSpec((1, C), lambda i, j: (0, 0)),
                pl.BlockSpec((C, tn2), lambda i, j: (0, j)),
                pl.BlockSpec((1, tn2), lambda i, j: (0, j)),
            ],
            out_specs=pl.BlockSpec((tr, tn2), lambda i, j: (i, j)),
            scratch_shapes=[pltpu.VMEM((tr, C), dt)],   # normalized activations
        ),
        compiler_params=pltpu.CompilerParams(
            dimension_semantics=("parallel", "arbitrary"),
            vmem_limit_bytes=_VMEM_LIMIT),
    )(attn2d, ln_g[None].astype(dt), ln_b[None].astype(dt), wo.T.astype(dt), bo[None].astype(dt))

    return out2d.reshape(L, B, C)


# --------------------------------------------------------------------------------------
# Pure-JAX reference (mirrors the torch forward, high-precision matmuls)
# --------------------------------------------------------------------------------------
def _reference_mha(query, wq, bq, wk, wv, bv, ln_g, ln_b, wo, bo, attn_bias, num_heads):
    hp = lax.Precision.HIGHEST
    L, B, C = query.shape
    H = num_heads
    Dh = C // H
    scaling = Dh ** -0.5
    q = (jnp.einsum("lbc,dc->lbd", query, wq, precision=hp) + bq) * scaling
    k = jnp.einsum("lbc,dc->lbd", query, wk, precision=hp)
    v = jnp.einsum("lbc,dc->lbd", query, wv, precision=hp) + bv
    q = jnp.transpose(q.reshape(L, B * H, Dh), (1, 0, 2))
    k = jnp.transpose(k.reshape(L, B * H, Dh), (1, 0, 2))
    v = jnp.transpose(v.reshape(L, B * H, Dh), (1, 0, 2))
    s = jnp.einsum("bld,bmd->blm", q, k, precision=hp)
    if attn_bias is not None:
        bias = attn_bias if attn_bias.ndim == 3 else attn_bias[None]
        s = s + bias
    p = jax.nn.softmax(s, axis=-1)
    a = jnp.einsum("blm,bmd->bld", p, v, precision=hp)
    a = jnp.transpose(a, (1, 0, 2)).reshape(L, B, C)
    mean = jnp.mean(a, axis=-1, keepdims=True)
    var = jnp.mean((a - mean) ** 2, axis=-1, keepdims=True)
    a = (a - mean) / jnp.sqrt(var + LN_EPS) * ln_g + ln_b
    return jnp.einsum("lbc,dc->lbd", a, wo, precision=hp) + bo


if __name__ == "__main__":
    # Tolerance accounts for default-precision MXU matmuls (bf16 passes) and the approx
    # reciprocal in the softmax normalization; layout/semantics bugs would be orders of
    # magnitude larger.
    TOL = 2e-2

    def run_case(seed, L, B, C, H, bias_kind, **block_kwargs):
        ks = jax.random.split(jax.random.PRNGKey(seed), 11)
        dt = jnp.float32
        sc = C ** -0.5
        query = jax.random.normal(ks[0], (L, B, C), dt)
        wq = jax.random.normal(ks[1], (C, C), dt) * sc
        bq = 0.1 * jax.random.normal(ks[2], (C,), dt)
        wk = jax.random.normal(ks[3], (C, C), dt) * sc
        wv = jax.random.normal(ks[4], (C, C), dt) * sc
        bv = 0.1 * jax.random.normal(ks[5], (C,), dt)
        ln_g = 1.0 + 0.1 * jax.random.normal(ks[6], (C,), dt)
        ln_b = 0.1 * jax.random.normal(ks[7], (C,), dt)
        wo = jax.random.normal(ks[8], (C, C), dt) * sc
        bo = 0.1 * jax.random.normal(ks[9], (C,), dt)
        if bias_kind == "full":
            attn_bias = 0.5 * jax.random.normal(ks[10], (B * H, L, L), dt)
        elif bias_kind == "broadcast":
            attn_bias = 0.5 * jax.random.normal(ks[10], (1, L, L), dt)
        else:
            attn_bias = None

        out = multihead_attention(query, wq, bq, wk, wv, bv, ln_g, ln_b, wo, bo,
                                  attn_bias, num_heads=H, **block_kwargs)
        out = jax.block_until_ready(out)
        ref = _reference_mha(query, wq, bq, wk, wv, bv, ln_g, ln_b, wo, bo, attn_bias, H)
        assert out.shape == (L, B, C)
        err = float(jnp.max(jnp.abs(out - ref)))
        assert err < TOL, (
            f"mismatch vs reference (err={err}) for L={L} B={B} C={C} H={H} bias={bias_kind}")

    # Small shapes consistent with the module (seq=8, batch=2, embed_dim=32, heads=4).
    run_case(0, L=8, B=2, C=32, H=4, bias_kind="full")       # per-(batch,head) bias
    run_case(1, L=8, B=2, C=32, H=4, bias_kind="none")       # no bias
    # Multi-tile flash path (2 q tiles x 2 kv tiles per head) + index_map-broadcast bias.
    run_case(2, L=256, B=1, C=32, H=4, bias_kind="broadcast", block_q=128, block_k=128)

    print("KERNEL_OK")
</pallas_src>

<mosaic_0001>
module attributes {stable_mosaic.version = 11 : i64} {
  func.func @_qkv_proj_kernel(%arg0: i32, %arg1: i32, %arg2: memref<16x32xf32, #tpu.memory_space<vmem>>, %arg3: memref<32x96xf32, #tpu.memory_space<vmem>>, %arg4: memref<1x96xf32, #tpu.memory_space<vmem>>, %arg5: memref<16x96xf32, #tpu.memory_space<vmem>>) attributes {dimension_semantics = [#tpu.dimension_semantics<parallel>, #tpu.dimension_semantics<parallel>], iteration_bounds = array<i64: 1, 1>, scalar_prefetch = 0 : i64, scratch_operands = 0 : i64, tpu.core_type = #tpu.core_type<tc>, window_params = [{transform_indices = @transform_0, window_bounds = array<i64: 16, 32>}, {transform_indices = @transform_1, window_bounds = array<i64: 32, 96>}, {transform_indices = @transform_2, window_bounds = array<i64: 1, 96>}, {transform_indices = @transform_3, window_bounds = array<i64: 16, 96>}]} {
    %c0 = arith.constant 0 : index
    %c0_0 = arith.constant 0 : index
    %0 = vector.load %arg2[%c0, %c0_0] : memref<16x32xf32, #tpu.memory_space<vmem>>, vector<16x32xf32>
    %c0_1 = arith.constant 0 : index
    %c0_2 = arith.constant 0 : index
    %1 = vector.load %arg3[%c0_1, %c0_2] : memref<32x96xf32, #tpu.memory_space<vmem>>, vector<32x96xf32>
    %cst = arith.constant dense<0.000000e+00> : vector<16x96xf32>
    %2 = tpu.matmul %0, %1, %cst {dimension_numbers = #tpu.dot_dimension_numbers<[1], [0], [0], [1], [0, 0, 1, 1], [], []>} : vector<16x32xf32>, vector<32x96xf32>, vector<16x96xf32> -> vector<16x96xf32>
    %c0_3 = arith.constant 0 : index
    %c0_4 = arith.constant 0 : index
    %3 = vector.load %arg4[%c0_3, %c0_4] : memref<1x96xf32, #tpu.memory_space<vmem>>, vector<1x96xf32>
    %4 = vector.broadcast %3 : vector<1x96xf32> to vector<16x96xf32>
    %5 = arith.addf %2, %4 : vector<16x96xf32>
    %c0_5 = arith.constant 0 : index
    %c0_6 = arith.constant 0 : index
    %6 = vector.load %arg5[%c0_5, %c0_6] : memref<16x96xf32, #tpu.memory_space<vmem>>, vector<16x96xf32>
    tpu.vector_store %arg5[%c0_5, %c0_6], %5 {strides = array<i32>} : memref<16x96xf32, #tpu.memory_space<vmem>>, vector<16x96xf32>,
    return
  }
  func.func @transform_0(%arg0: i32, %arg1: i32) -> (i32, i32) {
    %c0_i32 = arith.constant 0 : i32
    %c0_i32_0 = arith.constant 0 : i32
    return %arg1, %c0_i32 : i32, i32
  }
  func.func @transform_1(%arg0: i32, %arg1: i32) -> (i32, i32) {
    %c0_i32 = arith.constant 0 : i32
    %c0_i32_0 = arith.constant 0 : i32
    return %c0_i32, %arg0 : i32, i32
  }
  func.func @transform_2(%arg0: i32, %arg1: i32) -> (i32, i32) {
    %c0_i32 = arith.constant 0 : i32
    %c0_i32_0 = arith.constant 0 : i32
    return %c0_i32, %arg0 : i32, i32
  }
  func.func @transform_3(%arg0: i32, %arg1: i32) -> (i32, i32) {
    %c0_i32 = arith.constant 0 : i32
    return %arg1, %arg0 : i32, i32
  }
}

module attributes {stable_mosaic.version = 11 : i64} {
  func.func @_flash_attn_kernel(%arg0: i32, %arg1: i32, %arg2: i32, %arg3: memref<1x1x8x8xf32, #tpu.memory_space<vmem>>, %arg4: memref<1x1x8x8xf32, #tpu.memory_space<vmem>>, %arg5: memref<1x1x8x8xf32, #tpu.memory_space<vmem>>, %arg6: memref<1x8x8xf32, #tpu.memory_space<vmem>>, %arg7: memref<1x8x8xf32, #tpu.memory_space<vmem>>, %arg8: memref<1x8x1xf32, #tpu.memory_space<vmem>>, %arg9: memref<1x8x1xf32, #tpu.memory_space<vmem>>, %arg10: memref<1x8x8xf32, #tpu.memory_space<vmem>>) attributes {dimension_semantics = [#tpu.dimension_semantics<parallel>, #tpu.dimension_semantics<parallel>, #tpu.dimension_semantics<arbitrary>], iteration_bounds = array<i64: 8, 1, 1>, scalar_prefetch = 0 : i64, scratch_operands = 3 : i64, tpu.core_type = #tpu.core_type<tc>, window_params = [{transform_indices = @transform_0, window_bounds = array<i64: 1, 1, 8, 8>}, {transform_indices = @transform_1, window_bounds = array<i64: 1, 1, 8, 8>}, {transform_indices = @transform_2, window_bounds = array<i64: 1, 1, 8, 8>}, {transform_indices = @transform_3, window_bounds = array<i64: 1, 8, 8>}, {transform_indices = @transform_4, window_bounds = array<i64: 1, 8, 8>}]} {
    %c0_i32 = arith.constant 0 : i32
    %0 = arith.cmpi eq, %arg2, %c0_i32 : i32
    %1 = arith.extui %0 : i1 to i32
    %c0_i32_0 = arith.constant 0 : i32
    %2 = arith.cmpi ne, %1, %c0_i32_0 : i32
    scf.if %2 {
      %cst_38 = arith.constant 0xFF800000 : f32
      %47 = vector.broadcast %cst_38 : f32 to vector<1x8x1xf32>
      %c0_39 = arith.constant 0 : index
      %c0_40 = arith.constant 0 : index
      %c0_41 = arith.constant 0 : index
      %48 = vector.load %arg8[%c0_39, %c0_40, %c0_41] : memref<1x8x1xf32, #tpu.memory_space<vmem>>, vector<1x8x1xf32>
      tpu.vector_store %arg8[%c0_39, %c0_40, %c0_41], %47 {strides = array<i32>} : memref<1x8x1xf32, #tpu.memory_space<vmem>>, vector<1x8x1xf32>,
      %cst_42 = arith.constant 0.000000e+00 : f32
      %49 = vector.broadcast %cst_42 : f32 to vector<1x8x1xf32>
      %c0_43 = arith.constant 0 : index
      %c0_44 = arith.constant 0 : index
      %c0_45 = arith.constant 0 : index
      %50 = vector.load %arg9[%c0_43, %c0_44, %c0_45] : memref<1x8x1xf32, #tpu.memory_space<vmem>>, vector<1x8x1xf32>
      tpu.vector_store %arg9[%c0_43, %c0_44, %c0_45], %49 {strides = array<i32>} : memref<1x8x1xf32, #tpu.memory_space<vmem>>, vector<1x8x1xf32>,
      %cst_46 = arith.constant 0.000000e+00 : f32
      %51 = vector.broadcast %cst_46 : f32 to vector<1x8x8xf32>
      %c0_47 = arith.constant 0 : index
      %c0_48 = arith.constant 0 : index
      %c0_49 = arith.constant 0 : index
      %52 = vector.load %arg10[%c0_47, %c0_48, %c0_49] : memref<1x8x8xf32, #tpu.memory_space<vmem>>, vector<1x8x8xf32>
      tpu.vector_store %arg10[%c0_47, %c0_48, %c0_49], %51 {strides = array<i32>} : memref<1x8x8xf32, #tpu.memory_space<vmem>>, vector<1x8x8xf32>,
    } else {
    }
    %c0 = arith.constant 0 : index
    %c0_1 = arith.constant 0 : index
    %c0_2 = arith.constant 0 : index
    %c0_3 = arith.constant 0 : index
    %3 = vector.load %arg3[%c0, %c0_1, %c0_2, %c0_3] : memref<1x1x8x8xf32, #tpu.memory_space<vmem>>, vector<1x1x8x8xf32>
    %4 = vector.shape_cast %3 : vector<1x1x8x8xf32> to vector<8x8xf32>
    %c0_4 = arith.constant 0 : index
    %c0_5 = arith.constant 0 : index
    %c0_6 = arith.constant 0 : index
    %c0_7 = arith.constant 0 : index
    %5 = vector.load %arg4[%c0_4, %c0_5, %c0_6, %c0_7] : memref<1x1x8x8xf32, #tpu.memory_space<vmem>>, vector<1x1x8x8xf32>
    %6 = vector.shape_cast %5 : vector<1x1x8x8xf32> to vector<8x8xf32>
    %c0_8 = arith.constant 0 : index
    %c0_9 = arith.constant 0 : index
    %c0_10 = arith.constant 0 : index
    %c0_11 = arith.constant 0 : index
    %7 = vector.load %arg5[%c0_8, %c0_9, %c0_10, %c0_11] : memref<1x1x8x8xf32, #tpu.memory_space<vmem>>, vector<1x1x8x8xf32>
    %8 = vector.shape_cast %7 : vector<1x1x8x8xf32> to vector<8x8xf32>
    %cst = arith.constant dense<0.000000e+00> : vector<8x8xf32>
    %9 = tpu.matmul %4, %6, %cst {dimension_numbers = #tpu.dot_dimension_numbers<[1], [1], [0], [0], [0, 0, 1, 0], [], []>} : vector<8x8xf32>, vector<8x8xf32>, vector<8x8xf32> -> vector<8x8xf32>
    %c0_12 = arith.constant 0 : index
    %c0_13 = arith.constant 0 : index
    %c0_14 = arith.constant 0 : index
    %10 = vector.load %arg6[%c0_12, %c0_13, %c0_14] : memref<1x8x8xf32, #tpu.memory_space<vmem>>, vector<1x8x8xf32>
    %11 = vector.shape_cast %10 : vector<1x8x8xf32> to vector<8x8xf32>
    %12 = arith.addf %9, %11 : vector<8x8xf32>
    %c0_15 = arith.constant 0 : index
    %c0_16 = arith.constant 0 : index
    %c0_17 = arith.constant 0 : index
    %13 = vector.load %arg8[%c0_15, %c0_16, %c0_17] : memref<1x8x1xf32, #tpu.memory_space<vmem>>, vector<1x8x1xf32>
    %14 = vector.shape_cast %13 : vector<1x8x1xf32> to vector<8x1xf32>
    %cst_18 = arith.constant dense<0xFF800000> : vector<8xf32>
    %15 = vector.multi_reduction <maximumf>, %12, %cst_18 [1] : vector<8x8xf32> to vector<8xf32>
    %16 = vector.shape_cast %15 : vector<8xf32> to vector<8x1xf32>
    %17 = arith.maximumf %14, %16 : vector<8x1xf32>
    %18 = arith.subf %14, %17 : vector<8x1xf32>
    %19 = math.exp %18 : vector<8x1xf32>
    %20 = vector.broadcast %17 : vector<8x1xf32> to vector<8x8xf32>
    %21 = arith.subf %12, %20 : vector<8x8xf32>
    %22 = math.exp %21 : vector<8x8xf32>
    %c0_19 = arith.constant 0 : index
    %c0_20 = arith.constant 0 : index
    %c0_21 = arith.constant 0 : index
    %23 = vector.load %arg9[%c0_19, %c0_20, %c0_21] : memref<1x8x1xf32, #tpu.memory_space<vmem>>, vector<1x8x1xf32>
    %24 = vector.shape_cast %23 : vector<1x8x1xf32> to vector<8x1xf32>
    %25 = arith.mulf %19, %24 : vector<8x1xf32>
    %cst_22 = arith.constant dense<0.000000e+00> : vector<8xf32>
    %26 = vector.multi_reduction <add>, %22, %cst_22 [1] : vector<8x8xf32> to vector<8xf32>
    %27 = vector.shape_cast %26 : vector<8xf32> to vector<8x1xf32>
    %28 = arith.addf %25, %27 : vector<8x1xf32>
    %c0_23 = arith.constant 0 : index
    %c0_24 = arith.constant 0 : index
    %c0_25 = arith.constant 0 : index
    %29 = vector.load %arg9[%c0_23, %c0_24, %c0_25] : memref<1x8x1xf32, #tpu.memory_space<vmem>>, vector<1x8x1xf32>
    %30 = vector.shape_cast %29 : vector<1x8x1xf32> to vector<8x1xf32>
    %31 = vector.shape_cast %28 : vector<8x1xf32> to vector<1x8x1xf32>
    tpu.vector_store %arg9[%c0_23, %c0_24, %c0_25], %31 {strides = array<i32>} : memref<1x8x1xf32, #tpu.memory_space<vmem>>, vector<1x8x1xf32>,
    %c0_26 = arith.constant 0 : index
    %c0_27 = arith.constant 0 : index
    %c0_28 = arith.constant 0 : index
    %32 = vector.load %arg10[%c0_26, %c0_27, %c0_28] : memref<1x8x8xf32, #tpu.memory_space<vmem>>, vector<1x8x8xf32>
    %33 = vector.shape_cast %32 : vector<1x8x8xf32> to vector<8x8xf32>
    %34 = vector.broadcast %19 : vector<8x1xf32> to vector<8x8xf32>
    %35 = arith.mulf %34, %33 : vector<8x8xf32>
    %cst_29 = arith.constant dense<0.000000e+00> : vector<8x8xf32>
    %36 = tpu.matmul %22, %8, %cst_29 {dimension_numbers = #tpu.dot_dimension_numbers<[1], [0], [0], [1], [0, 0, 1, 1], [], []>} : vector<8x8xf32>, vector<8x8xf32>, vector<8x8xf32> -> vector<8x8xf32>
    %37 = arith.addf %35, %36 : vector<8x8xf32>
    %c0_30 = arith.constant 0 : index
    %c0_31 = arith.constant 0 : index
    %c0_32 = arith.constant 0 : index
    %38 = vector.load %arg10[%c0_30, %c0_31, %c0_32] : memref<1x8x8xf32, #tpu.memory_space<vmem>>, vector<1x8x8xf32>
    %39 = vector.shape_cast %38 : vector<1x8x8xf32> to vector<8x8xf32>
    %40 = vector.shape_cast %37 : vector<8x8xf32> to vector<1x8x8xf32>
    tpu.vector_store %arg10[%c0_30, %c0_31, %c0_32], %40 {strides = array<i32>} : memref<1x8x8xf32, #tpu.memory_space<vmem>>, vector<1x8x8xf32>,
    %c0_33 = arith.constant 0 : index
    %c0_34 = arith.constant 0 : index
    %c0_35 = arith.constant 0 : index
    %41 = vector.load %arg8[%c0_33, %c0_34, %c0_35] : memref<1x8x1xf32, #tpu.memory_space<vmem>>, vector<1x8x1xf32>
    %42 = vector.shape_cast %41 : vector<1x8x1xf32> to vector<8x1xf32>
    %43 = vector.shape_cast %17 : vector<8x1xf32> to vector<1x8x1xf32>
    tpu.vector_store %arg8[%c0_33, %c0_34, %c0_35], %43 {strides = array<i32>} : memref<1x8x1xf32, #tpu.memory_space<vmem>>, vector<1x8x1xf32>,
    %c0_i32_36 = arith.constant 0 : i32
    %44 = arith.cmpi eq, %arg2, %c0_i32_36 : i32
    %45 = arith.extui %44 : i1 to i32
    %c0_i32_37 = arith.constant 0 : i32
    %46 = arith.cmpi ne, %45, %c0_i32_37 : i32
    scf.if %46 {
      %c0_38 = arith.constant 0 : index
      %c0_39 = arith.constant 0 : index
      %c0_40 = arith.constant 0 : index
      %47 = vector.load %arg10[%c0_38, %c0_39, %c0_40] : memref<1x8x8xf32, #tpu.memory_space<vmem>>, vector<1x8x8xf32>
      %48 = vector.shape_cast %47 : vector<1x8x8xf32> to vector<8x8xf32>
      %c0_41 = arith.constant 0 : index
      %c0_42 = arith.constant 0 : index
      %c0_43 = arith.constant 0 : index
      %49 = vector.load %arg9[%c0_41, %c0_42, %c0_43] : memref<1x8x1xf32, #tpu.memory_space<vmem>>, vector<1x8x1xf32>
      %50 = vector.shape_cast %49 : vector<1x8x1xf32> to vector<8x1xf32>
      %51 = tpu.reciprocal %50 {approx = true} : vector<8x1xf32> -> vector<8x1xf32>
      %52 = vector.broadcast %51 : vector<8x1xf32> to vector<8x8xf32>
      %53 = arith.mulf %48, %52 : vector<8x8xf32>
      %c0_44 = arith.constant 0 : index
      %c0_45 = arith.constant 0 : index
      %c0_46 = arith.constant 0 : index
      %54 = vector.load %arg7[%c0_44, %c0_45, %c0_46] : memref<1x8x8xf32, #tpu.memory_space<vmem>>, vector<1x8x8xf32>
      %55 = vector.shape_cast %54 : vector<1x8x8xf32> to vector<8x8xf32>
      %56 = vector.shape_cast %53 : vector<8x8xf32> to vector<1x8x8xf32>
      tpu.vector_store %arg7[%c0_44, %c0_45, %c0_46], %56 {strides = array<i32>} : memref<1x8x8xf32, #tpu.memory_space<vmem>>, vector<1x8x8xf32>,
    } else {
    }
    return
  }
  func.func @transform_0(%arg0: i32, %arg1: i32, %arg2: i32) -> (i32, i32, i32, i32) {
    %c0_i32 = arith.constant 0 : i32
    %c0_i32_0 = arith.constant 0 : i32
    %c0_i32_1 = arith.constant 0 : i32
    return %c0_i32, %arg0, %arg1, %c0_i32_0 : i32, i32, i32, i32
  }
  func.func @transform_1(%arg0: i32, %arg1: i32, %arg2: i32) -> (i32, i32, i32, i32) {
    %c1_i32 = arith.constant 1 : i32
    %c0_i32 = arith.constant 0 : i32
    %c0_i32_0 = arith.constant 0 : i32
    return %c1_i32, %arg0, %arg2, %c0_i32 : i32, i32, i32, i32
  }
  func.func @transform_2(%arg0: i32, %arg1: i32, %arg2: i32) -> (i32, i32, i32, i32) {
    %c2_i32 = arith.constant 2 : i32
    %c0_i32 = arith.constant 0 : i32
    %c0_i32_0 = arith.constant 0 : i32
    return %c2_i32, %arg0, %arg2, %c0_i32 : i32, i32, i32, i32
  }
  func.func @transform_3(%arg0: i32, %arg1: i32, %arg2: i32) -> (i32, i32, i32) {
    %c0_i32 = arith.constant 0 : i32
    return %arg0, %arg1, %arg2 : i32, i32, i32
  }
  func.func @transform_4(%arg0: i32, %arg1: i32, %arg2: i32) -> (i32, i32, i32) {
    %c0_i32 = arith.constant 0 : i32
    %c0_i32_0 = arith.constant 0 : i32
    return %arg0, %arg1, %c0_i32 : i32, i32, i32
  }
}

module attributes {stable_mosaic.version = 11 : i64} {
  func.func @_ln_out_proj_kernel(%arg0: i32, %arg1: i32, %arg2: memref<16x32xf32, #tpu.memory_space<vmem>>, %arg3: memref<1x32xf32, #tpu.memory_space<vmem>>, %arg4: memref<1x32xf32, #tpu.memory_space<vmem>>, %arg5: memref<32x32xf32, #tpu.memory_space<vmem>>, %arg6: memref<1x32xf32, #tpu.memory_space<vmem>>, %arg7: memref<16x32xf32, #tpu.memory_space<vmem>>, %arg8: memref<16x32xf32, #tpu.memory_space<vmem>>) attributes {dimension_semantics = [#tpu.dimension_semantics<parallel>, #tpu.dimension_semantics<arbitrary>], iteration_bounds = array<i64: 1, 1>, scalar_prefetch = 0 : i64, scratch_operands = 1 : i64, tpu.core_type = #tpu.core_type<tc>, window_params = [{transform_indices = @transform_0, window_bounds = array<i64: 16, 32>}, {pipeline_mode = #tpu.pipeline_mode<synchronous>, transform_indices = @transform_1, window_bounds = array<i64: 1, 32>}, {pipeline_mode = #tpu.pipeline_mode<synchronous>, transform_indices = @transform_2, window_bounds = array<i64: 1, 32>}, {transform_indices = @transform_3, window_bounds = array<i64: 32, 32>}, {transform_indices = @transform_4, window_bounds = array<i64: 1, 32>}, {transform_indices = @transform_5, window_bounds = array<i64: 16, 32>}]} {
    %c0_i32 = arith.constant 0 : i32
    %0 = arith.cmpi eq, %arg1, %c0_i32 : i32
    %1 = arith.extui %0 : i1 to i32
    %c0_i32_0 = arith.constant 0 : i32
    %2 = arith.cmpi ne, %1, %c0_i32_0 : i32
    scf.if %2 {
      %c0_8 = arith.constant 0 : index
      %c0_9 = arith.constant 0 : index
      %10 = vector.load %arg2[%c0_8, %c0_9] : memref<16x32xf32, #tpu.memory_space<vmem>>, vector<16x32xf32>
      %cst_10 = arith.constant dense<0.000000e+00> : vector<16xf32>
      %11 = vector.multi_reduction <add>, %10, %cst_10 [1] : vector<16x32xf32> to vector<16xf32>
      %12 = vector.shape_cast %11 : vector<16xf32> to vector<16x1xf32>
      %cst_11 = arith.constant 3.200000e+01 : f32
      %13 = vector.broadcast %cst_11 : f32 to vector<16x1xf32>
      %14 = arith.divf %12, %13 : vector<16x1xf32>
      %15 = vector.broadcast %14 : vector<16x1xf32> to vector<16x32xf32>
      %16 = arith.subf %10, %15 : vector<16x32xf32>
      %17 = arith.mulf %16, %16 : vector<16x32xf32>
      %cst_12 = arith.constant dense<0.000000e+00> : vector<16xf32>
      %18 = vector.multi_reduction <add>, %17, %cst_12 [1] : vector<16x32xf32> to vector<16xf32>
      %19 = vector.shape_cast %18 : vector<16xf32> to vector<16x1xf32>
      %cst_13 = arith.constant 3.200000e+01 : f32
      %20 = vector.broadcast %cst_13 : f32 to vector<16x1xf32>
      %21 = arith.divf %19, %20 : vector<16x1xf32>
      %cst_14 = arith.constant 9.99999974E-6 : f32
      %22 = vector.broadcast %cst_14 : f32 to vector<16x1xf32>
      %23 = arith.addf %21, %22 : vector<16x1xf32>
      %24 = math.rsqrt %23 : vector<16x1xf32>
      %25 = vector.broadcast %24 : vector<16x1xf32> to vector<16x32xf32>
      %26 = arith.mulf %16, %25 : vector<16x32xf32>
      %c0_15 = arith.constant 0 : index
      %c0_16 = arith.constant 0 : index
      %27 = vector.load %arg3[%c0_15, %c0_16] : memref<1x32xf32, #tpu.memory_space<vmem>>, vector<1x32xf32>
      %28 = vector.broadcast %27 : vector<1x32xf32> to vector<16x32xf32>
      %29 = arith.mulf %26, %28 : vector<16x32xf32>
      %c0_17 = arith.constant 0 : index
      %c0_18 = arith.constant 0 : index
      %30 = vector.load %arg4[%c0_17, %c0_18] : memref<1x32xf32, #tpu.memory_space<vmem>>, vector<1x32xf32>
      %31 = vector.broadcast %30 : vector<1x32xf32> to vector<16x32xf32>
      %32 = arith.addf %29, %31 : vector<16x32xf32>
      %c0_19 = arith.constant 0 : index
      %c0_20 = arith.constant 0 : index
      %33 = vector.load %arg8[%c0_19, %c0_20] : memref<16x32xf32, #tpu.memory_space<vmem>>, vector<16x32xf32>
      tpu.vector_store %arg8[%c0_19, %c0_20], %32 {strides = array<i32>} : memref<16x32xf32, #tpu.memory_space<vmem>>, vector<16x32xf32>,
    } else {
    }
    %c0 = arith.constant 0 : index
    %c0_1 = arith.constant 0 : index
    %3 = vector.load %arg8[%c0, %c0_1] : memref<16x32xf32, #tpu.memory_space<vmem>>, vector<16x32xf32>
    %c0_2 = arith.constant 0 : index
    %c0_3 = arith.constant 0 : index
    %4 = vector.load %arg5[%c0_2, %c0_3] : memref<32x32xf32, #tpu.memory_space<vmem>>, vector<32x32xf32>
    %cst = arith.constant dense<0.000000e+00> : vector<16x32xf32>
    %5 = tpu.matmul %3, %4, %cst {dimension_numbers = #tpu.dot_dimension_numbers<[1], [0], [0], [1], [0, 0, 1, 1], [], []>} : vector<16x32xf32>, vector<32x32xf32>, vector<16x32xf32> -> vector<16x32xf32>
    %c0_4 = arith.constant 0 : index
    %c0_5 = arith.constant 0 : index
    %6 = vector.load %arg6[%c0_4, %c0_5] : memref<1x32xf32, #tpu.memory_space<vmem>>, vector<1x32xf32>
    %7 = vector.broadcast %6 : vector<1x32xf32> to vector<16x32xf32>
    %8 = arith.addf %5, %7 : vector<16x32xf32>
    %c0_6 = arith.constant 0 : index
    %c0_7 = arith.constant 0 : index
    %9 = vector.load %arg7[%c0_6, %c0_7] : memref<16x32xf32, #tpu.memory_space<vmem>>, vector<16x32xf32>
    tpu.vector_store %arg7[%c0_6, %c0_7], %8 {strides = array<i32>} : memref<16x32xf32, #tpu.memory_space<vmem>>, vector<16x32xf32>,
    return
  }
  func.func @transform_0(%arg0: i32, %arg1: i32) -> (i32, i32) {
    %c0_i32 = arith.constant 0 : i32
    %c0_i32_0 = arith.constant 0 : i32
    return %arg0, %c0_i32 : i32, i32
  }
  func.func @transform_1(%arg0: i32, %arg1: i32) -> (i32, i32) {
    %c0_i32 = arith.constant 0 : i32
    %c0_i32_0 = arith.constant 0 : i32
    %c0_i32_1 = arith.constant 0 : i32
    return %c0_i32, %c0_i32_0 : i32, i32
  }
  func.func @transform_2(%arg0: i32, %arg1: i32) -> (i32, i32) {
    %c0_i32 = arith.constant 0 : i32
    %c0_i32_0 = arith.constant 0 : i32
    %c0_i32_1 = arith.constant 0 : i32
    return %c0_i32, %c0_i32_0 : i32, i32
  }
  func.func @transform_3(%arg0: i32, %arg1: i32) -> (i32, i32) {
    %c0_i32 = arith.constant 0 : i32
    %c0_i32_0 = arith.constant 0 : i32
    return %c0_i32, %arg1 : i32, i32
  }
  func.func @transform_4(%arg0: i32, %arg1: i32) -> (i32, i32) {
    %c0_i32 = arith.constant 0 : i32
    %c0_i32_0 = arith.constant 0 : i32
    return %c0_i32, %arg1 : i32, i32
  }
  func.func @transform_5(%arg0: i32, %arg1: i32) -> (i32, i32) {
    %c0_i32 = arith.constant 0 : i32
    return %arg0, %arg1 : i32, i32
  }
}

</mosaic_0001>

<llo_original>
// kernel: multihead_attention.3
$region0: #{multihead_attention.3}
  #allocation0 [shape = 'u32[]', space=smem, size = 0x4, offset = 0x4, fixed_abs, tag = 'smem constant byte address 0x4 - core index']
  #allocation1 [shape = 'u32[144,128]{1,0:T(1,128)}', space=vmem, size = 0x12000, scoped, tag = 'internal scratch']
  %s0 = inlined_call_operand.vmem [shape: f32[16,32], index: 0, kind: input, shape index: {}]
  %s1 = inlined_call_operand.vmem [shape: f32[32,96], index: 1, kind: input, shape index: {}]
  %s2 = inlined_call_operand.vmem [shape: f32[1,96], index: 2, kind: input, shape index: {}]
  %s3 = inlined_call_operand.vmem [shape: f32[16,96], index: 3, kind: output, shape index: {}]
  %s4 = sld [smem:[#allocation0]]
  $region22: #{multihead_attention.3} parent=0
    _
  %s6 = ssub.s32 1, %s4
  %s7 = scalar_select 0, %s6, %s4
  // Predicated region
  $region2: #{multihead_attention.3} parent=0 // pred_check
    _
  $region3: #{multihead_attention.3} parent=0 // pred_check_branch
    %9 = sbr.rel (0) target = $region5
  $region4: #{multihead_attention.3} parent=0 // pred_region
    _
  $region5: #{multihead_attention.3} parent=0 // pred_fallthru
    _
  // Predicated region
  $region6: #{multihead_attention.3} parent=0 // pred_check
    _
  $region7: #{multihead_attention.3} parent=0 // pred_check_branch
    %11 = sbr.rel (0) target = $region9
  $region8: #{multihead_attention.3} parent=0 // pred_region
    _
  $region9: #{multihead_attention.3} parent=0 // pred_fallthru
    _
  // Predicated region
  $region10: #{multihead_attention.3} parent=0 // pred_check
    _
  $region11: #{multihead_attention.3} parent=0 // pred_check_branch
    %13 = sbr.rel (0) target = $region13
  $region12: #{multihead_attention.3} parent=0 // pred_region
    _
  $region13: #{multihead_attention.3} parent=0 // pred_fallthru
    _
  %v14 = vld [vmem:[%s0] sm:$0xff]
  %v15 = vld [vmem:[%s0 + $0x8] sm:$0xff]
  %v16 = vld [vmem:[%s1] sm:$0xff]
  %v17 = vld [vmem:[%s1 + $0x8] sm:$0xff]
  %v18 = vld [vmem:[%s1 + $0x10] sm:$0xff]
  %v19 = vld [vmem:[%s1 + $0x18] sm:$0xff]
  %v20 = vld [vmem:[%s2] sm:$0x1]
  %v22 = vlaneseq
  %v23 = vshrl.u32 %v22, 7
  %v24 = vsub.s32 0, %v23
  %v25 = vrot.slane %v20, %v24
  %vm27 = vcmask 261120
  %v29 = vsel %vm27, %v14, 0
  %v32 = vsel %vm27, %v15, 0
  %34 = vmatprep.subr.mxu0 0.0
  %35 = vmatpush1.msra.mxu0 %v16
  %36 = vmatprep.subr.mxu0 0.0
  %37 = vmatpush1.msra.mxu0 %v17
  %38 = vmatprep.subr.mxu0 0.0
  %39 = vmatpush1.msra.mxu0 %v18
  %40 = vmatprep.subr.mxu0 0.0
  %41 = vmatpush1.msra.mxu0 %v19
  %42 = vmatprep.subr.mxu0 0.0
  %43 = vmatpush1.msra.mxu0 0.0
  %44 = vmatprep.subr.mxu0 0.0
  %45 = vmatpush1.msra.mxu0 0.0
  %46 = vmatprep.subr.mxu0 0.0
  %47 = vmatpush1.msra.mxu0 0.0
  %48 = vmatprep.subr.mxu0 0.0
  %49 = vmatpush1.msra.mxu0 0.0
  %50 = vmatprep.subr.mxu0 0.0
  %51 = vmatpush1.msra.mxu0 0.0
  %52 = vmatprep.subr.mxu0 0.0
  %53 = vmatpush1.msra.mxu0 0.0
  %54 = vmatprep.subr.mxu0 0.0
  %55 = vmatpush1.msra.mxu0 0.0
  %56 = vmatprep.subr.mxu0 0.0
  %57 = vmatpush1.msra.mxu0 0.0
  %58 = vmatprep.subr.mxu0 0.0
  %59 = vmatpush1.msra.mxu0 0.0
  %60 = vmatprep.subr.mxu0 0.0
  %61 = vmatpush1.msra.mxu0 0.0
  %62 = vmatprep.subr.mxu0 0.0
  %63 = vmatpush1.msra.mxu0 0.0
  %64 = vmatprep.subr.mxu0 0.0
  %65 = vmatpush1.msra.mxu0 0.0
  %66 = vmatprep.subr.mxu0 0.0
  %67 = vmatpush1.msra.mxu0 0.0
  %68 = vmatprep.subr.mxu0 0.0
  %69 = vmatpush1.msra.mxu0 0.0
  %70 = vmatprep.subr.mxu0 0.0
  %71 = vmatpush1.msra.mxu0 0.0
  %72 = vmatprep.subr.mxu0 0.0
  %73 = vmatpush1.msra.mxu0 0.0
  %74 = vmatprep.subr.mxu0 0.0
  %75 = vmatpush1.msra.mxu0 0.0
  %76 = vmatprep.subr.mxu0 0.0
  %77 = vmatpush1.msra.mxu0 0.0
  %78 = vmatprep.subr.mxu0 0.0
  %79 = vmatpush1.msra.mxu0 0.0
  %80 = vmatprep.subr.mxu0 0.0
  %81 = vmatpush1.msra.mxu0 0.0
  %82 = vmatprep.subr.mxu0 0.0
  %83 = vmatpush1.msra.mxu0 0.0
  %84 = vmatprep.subr.mxu0 0.0
  %85 = vmatpush1.msra.mxu0 0.0
  %86 = vmatprep.subr.mxu0 0.0
  %87 = vmatpush1.msra.mxu0 0.0
  %88 = vmatprep.subr.mxu0 0.0
  %89 = vmatpush1.msra.mxu0 0.0
  %90 = vmatprep.subr.mxu0 0.0
  %91 = vmatpush1.msra.mxu0 0.0
  %92 = vmatprep.subr.mxu0 0.0
  %93 = vmatpush1.msra.mxu0 0.0
  %94 = vmatprep.subr.mxu0 0.0
  %95 = vmatpush1.msra.mxu0 0.0
  %96 = vmatprep.subr.mxu0 0.0
  %97 = vmatpush1.msra.mxu0 0.0
  %98 = vmatprep.mubr.f32.mxu0 0.0
  %99 = vmatmul.mubr.f32.gmra.mrb[0].mxu0 %v29
  %v100 = vpop.f32.mrb[0].mxu0
  %v101 = vadd.f32 %v25, %v100
  %v102 = vpop.f32.mrb[0].mxu0
  %103 = vmatprep.mubr.f32.mxu0 0.0
  %104 = vmatmul.mubr.f32.gmra.mrb[0].mxu0 %v32
  %v105 = vpop.f32.mrb[0].mxu0
  %v106 = vadd.f32 %v25, %v105
  %v107 = vpop.f32.mrb[0].mxu0
  %108 = vdwg.mxu0
  %vm109 = vcmask 785408
  %110 = vst.msk [vmem:[%s3] sm:$0xff] %vm109, %v101
  %111 = vst.msk [vmem:[%s3 + $0x8] sm:$0xff] %vm109, %v106
  // Predicated region
  $region14: #{multihead_attention.3} parent=0 // pred_check
    _
  $region15: #{multihead_attention.3} parent=0 // pred_check_branch
    %113 = sbr.rel (0) target = $region17
  $region16: #{multihead_attention.3} parent=0 // pred_region
    _
  $region17: #{multihead_attention.3} parent=0 // pred_fallthru
    _
  // Predicated region
  $region18: #{multihead_attention.3} parent=0 // pred_check
    _
  $region19: #{multihead_attention.3} parent=0 // pred_check_branch
    %115 = sbr.rel (0) target = $region21
  $region20: #{multihead_attention.3} parent=0 // pred_region
    _
  $region21: #{multihead_attention.3} parent=0 // pred_fallthru
    _

// kernel: multihead_attention.4
$region0: #{multihead_attention.4}
  #allocation0 [shape = 'u32[]', space=smem, size = 0x4, offset = 0x4, fixed_abs, tag = 'smem constant byte address 0x4 - core index']
  #allocation1 [shape = 'u32[144,128]{1,0:T(1,128)}', space=vmem, size = 0x12000, scoped, tag = 'internal scratch']
  #allocation2 [shape = 'f32[1,8,1]{2,1,0:T(8,128)}', space=vmem, size = 0x1000, scoped, tag = 'scratch operand']
  #allocation3 [shape = 'f32[1,8,1]{2,1,0:T(8,128)}', space=vmem, size = 0x1000, scoped, tag = 'scratch operand']
  #allocation4 [shape = 'f32[1,8,8]{2,1,0:T(8,128)}', space=vmem, size = 0x1000, scoped, tag = 'scratch operand']
  %s0 = inlined_call_operand.vmem [shape: f32[3,8,8,8], index: 0, kind: input, shape index: {}, may-alias: {0,1,2}]
  %s1 = inlined_call_operand.vmem [shape: f32[3,8,8,8], index: 1, kind: input, shape index: {}, may-alias: {0,1,2}]
  %s2 = inlined_call_operand.vmem [shape: f32[3,8,8,8], index: 2, kind: input, shape index: {}, may-alias: {0,1,2}]
  %s3 = inlined_call_operand.vmem [shape: f32[8,8,8], index: 3, kind: input, shape index: {}]
  %s4 = inlined_call_operand.vmem [shape: f32[8,8,8], index: 4, kind: output, shape index: {}]
  %s5 = sld [smem:[#allocation0]]
  $region57: #{multihead_attention.4} parent=0
    _
  %s7 = ssub.s32 1, %s5
  %s8 = scalar_select 0, %s7, %s5
  loop: start=0, step=1, limit=10
  $region2: #{multihead_attention.4} parent=0 // loop_pre_header
    _
  $region3: #{multihead_attention.4} parent=0 // loop_header
    %s10 = sphi 0, %s14
    %p11 = scmp.ge.s32.totalorder %s10, 10
    %s17 = sphi 0, %s36
    %s18 = sphi 0, %s32
    %s19 = sphi 0, %s28
    %s20 = sphi 0, %s17
    %s21 = sphi 0, %s18
    %s22 = sphi 0, %s19
    %s23 = sphi 0, %s20
    %s24 = sphi 0, %s21
    %s25 = sphi 0, %s22
    %s41 = sphi 0, %s43
    %s44 = sphi 0, %s41
    %s45 = sphi 0, %s44
    %s61 = sphi 0, %s45
    %s69 = sphi 0, %s71
    %s72 = sphi 0, %s69
    %s73 = sphi 0, %s72
    %s89 = sphi 0, %s73
    %s97 = sphi 0, %s99
    %s100 = sphi 0, %s97
    %s101 = sphi 0, %s100
    %s117 = sphi 0, %s101
    %s127 = sphi 0, %s129
    %s130 = sphi 0, %s127
    %s131 = sphi 0, %s130
    %s147 = sphi 0, %s131
    %s155 = sphi 0, %s157
    %s158 = sphi 0, %s155
    %s159 = sphi 0, %s158
    %s175 = sphi 0, %s159
  $region4: #{multihead_attention.4} parent=0 // loop_header_branch
    %13 = sbr.rel (%p11) target = $region8
  $region5: #{multihead_attention.4} parent=0 // loop_body
    %s15 = ssub.s32 %s10, 1
    %s16 = ssub.s32 %s10, 2
    %s26 = sadd.s32 1, %s19
    %p27 = scmp.ge.s32.totalorder %s26, 1
    %s28 = scalar_select %p27, 0, %s26
    %s29 = sadd.s32 1, %s18
    %s30 = scalar_select %p27, %s29, %s18
    %p31 = scmp.ge.s32.totalorder %s30, 1
    %s32 = scalar_select %p31, 0, %s30
    %s33 = sadd.s32 1, %s17
    %s34 = scalar_select %p31, %s33, %s17
    %p35 = scmp.ge.s32.totalorder %s34, 8
    %s36 = scalar_select %p35, 0, %s34
    %s37 = ssub.s32 %s17, %s36
    %s38 = ssub.s32 %s18, %s32
    %s39 = sor.u32 %s37, %s38
    %p40 = scmp.eq.s32.totalorder %s39, 0
    %s42 = sadd.s32 %s41, 1
    %s43 = scalar_select %p40, %s41, %s42
    %p46 = pneg %p40
    %p47 = scmp.eq.s32.totalorder %s10, 7
    %p48 = por %p46, %p47
    %p49 = scmp.ne.s32.totalorder %s41, %s44
    %p50 = scmp.eq.s32.totalorder %s10, 0
    %p51 = por %p49, %p50
    %p52 = scmp.ne.s32.totalorder %s41, %s44
    %p53 = scmp.eq.s32.totalorder %s15, 7
    %p54 = por %p52, %p53
    %p55 = scmp.ne.s32.totalorder %s44, %s45
    %p56 = scmp.eq.s32.totalorder %s15, 0
    %p57 = por %p55, %p56
    %p58 = scmp.ne.s32.totalorder %s44, %s45
    %p59 = scmp.eq.s32.totalorder %s16, 7
    %p60 = por %p58, %p59
    %p62 = scmp.ne.s32.totalorder %s45, %s61
    %p63 = scmp.eq.s32.totalorder %s16, 0
    %p64 = por %p62, %p63
    %s65 = ssub.s32 %s17, %s36
    %s66 = ssub.s32 %s19, %s28
    %s67 = sor.u32 %s65, %s66
    %p68 = scmp.eq.s32.totalorder %s67, 0
    %s70 = sadd.s32 %s69, 1
    %s71 = scalar_select %p68, %s69, %s70
    %p74 = pneg %p68
    %p75 = scmp.eq.s32.totalorder %s10, 7
    %p76 = por %p74, %p75
    %p77 = scmp.ne.s32.totalorder %s69, %s72
    %p78 = scmp.eq.s32.totalorder %s10, 0
    %p79 = por %p77, %p78
    %p80 = scmp.ne.s32.totalorder %s69, %s72
    %p81 = scmp.eq.s32.totalorder %s15, 7
    %p82 = por %p80, %p81
    %p83 = scmp.ne.s32.totalorder %s72, %s73
    %p84 = scmp.eq.s32.totalorder %s15, 0
    %p85 = por %p83, %p84
    %p86 = scmp.ne.s32.totalorder %s72, %s73
    %p87 = scmp.eq.s32.totalorder %s16, 7
    %p88 = por %p86, %p87
    %p90 = scmp.ne.s32.totalorder %s73, %s89
    %p91 = scmp.eq.s32.totalorder %s16, 0
    %p92 = por %p90, %p91
    %s93 = ssub.s32 %s17, %s36
    %s94 = ssub.s32 %s19, %s28
    %s95 = sor.u32 %s93, %s94
    %p96 = scmp.eq.s32.totalorder %s95, 0
    %s98 = sadd.s32 %s97, 1
    %s99 = scalar_select %p96, %s97, %s98
    %p102 = pneg %p96
    %p103 = scmp.eq.s32.totalorder %s10, 7
    %p104 = por %p102, %p103
    %p105 = scmp.ne.s32.totalorder %s97, %s100
    %p106 = scmp.eq.s32.totalorder %s10, 0
    %p107 = por %p105, %p106
    %p108 = scmp.ne.s32.totalorder %s97, %s100
    %p109 = scmp.eq.s32.totalorder %s15, 7
    %p110 = por %p108, %p109
    %p111 = scmp.ne.s32.totalorder %s100, %s101
    %p112 = scmp.eq.s32.totalorder %s15, 0
    %p113 = por %p111, %p112
    %p114 = scmp.ne.s32.totalorder %s100, %s101
    %p115 = scmp.eq.s32.totalorder %s16, 7
    %p116 = por %p114, %p115
    %p118 = scmp.ne.s32.totalorder %s101, %s117
    %p119 = scmp.eq.s32.totalorder %s16, 0
    %p120 = por %p118, %p119
    %s121 = ssub.s32 %s17, %s36
    %s122 = ssub.s32 %s18, %s32
    %s123 = sor.u32 %s121, %s122
    %s124 = ssub.s32 %s19, %s28
    %s125 = sor.u32 %s123, %s124
    %p126 = scmp.eq.s32.totalorder %s125, 0
    %s128 = sadd.s32 %s127, 1
    %s129 = scalar_select %p126, %s127, %s128
    %p132 = pneg %p126
    %p133 = scmp.eq.s32.totalorder %s10, 7
    %p134 = por %p132, %p133
    %p135 = scmp.ne.s32.totalorder %s127, %s130
    %p136 = scmp.eq.s32.totalorder %s10, 0
    %p137 = por %p135, %p136
    %p138 = scmp.ne.s32.totalorder %s127, %s130
    %p139 = scmp.eq.s32.totalorder %s15, 7
    %p140 = por %p138, %p139
    %p141 = scmp.ne.s32.totalorder %s130, %s131
    %p142 = scmp.eq.s32.totalorder %s15, 0
    %p143 = por %p141, %p142
    %p144 = scmp.ne.s32.totalorder %s130, %s131
    %p145 = scmp.eq.s32.totalorder %s16, 7
    %p146 = por %p144, %p145
    %p148 = scmp.ne.s32.totalorder %s131, %s147
    %p149 = scmp.eq.s32.totalorder %s16, 0
    %p150 = por %p148, %p149
    %s151 = ssub.s32 %s17, %s36
    %s152 = ssub.s32 %s18, %s32
    %s153 = sor.u32 %s151, %s152
    %p154 = scmp.eq.s32.totalorder %s153, 0
    %s156 = sadd.s32 %s155, 1
    %s157 = scalar_select %p154, %s155, %s156
    %p160 = pneg %p154
    %p161 = scmp.eq.s32.totalorder %s10, 7
    %p162 = por %p160, %p161
    %p163 = scmp.ne.s32.totalorder %s155, %s158
    %p164 = scmp.eq.s32.totalorder %s10, 0
    %p165 = por %p163, %p164
    %p166 = scmp.ne.s32.totalorder %s155, %s158
    %p167 = scmp.eq.s32.totalorder %s15, 7
    %p168 = por %p166, %p167
    %p169 = scmp.ne.s32.totalorder %s158, %s159
    %p170 = scmp.eq.s32.totalorder %s15, 0
    %p171 = por %p169, %p170
    %p172 = scmp.ne.s32.totalorder %s158, %s159
    %p173 = scmp.eq.s32.totalorder %s16, 7
    %p174 = por %p172, %p173
    %p176 = scmp.ne.s32.totalorder %s159, %s175
    %p177 = scmp.eq.s32.totalorder %s16, 0
    %p178 = por %p176, %p177
    %p179 = scmp.le.s32.totalorder 1, %s10
    %p180 = scmp.lt.s32.totalorder %s10, 9
    %p181 = pnand %p179, %p180
    %p182 = pneg %p181
    // Predicated region
    $region9: #{multihead_attention.4} parent=5 // pred_check
      _
    $region10: #{multihead_attention.4} parent=5 // pred_check_branch
      %184 = sbr.rel (%p181) target = $region12
    $region11: #{multihead_attention.4} parent=5 // pred_region
      %s185 = ssub.s32 %s10, 1
    $region12: #{multihead_attention.4} parent=5 // pred_fallthru
      _
    %p186 = scmp.lt.s32.totalorder %s10, 8
    // Predicated region
    $region13: #{multihead_attention.4} parent=5 // pred_check
      %p187 = pneg %p186
    $region14: #{multihead_attention.4} parent=5 // pred_check_branch
      %189 = sbr.rel (%p187) target = $region16
    $region15: #{multihead_attention.4} parent=5 // pred_region
      // Predicated region
      $region17: #{multihead_attention.4} parent=15 // pred_check
        %p190 = pneg %p51
      $region18: #{multihead_attention.4} parent=15 // pred_check_branch
        %192 = sbr.rel (%p190) target = $region20
      $region19: #{multihead_attention.4} parent=15 // pred_region
        %p193 = scmp.lt.s32.totalorder %s17, 7
        %s194 = scalar_select %p193, %s17, 7
        %p195 = scmp.lt.s32.totalorder %s18, 0
        %s196 = scalar_select %p195, %s18, 0
        %s197 = sadd.s32 %s196, %s194
        %s198 = smul.addr %s197, 8
        %s199 = scalar_lea.vmem %s0, %s198
      $region20: #{multihead_attention.4} parent=15 // pred_fallthru
        _
      // Predicated region
      $region21: #{multihead_attention.4} parent=15 // pred_check
        %p200 = pneg %p79
      $region22: #{multihead_attention.4} parent=15 // pred_check_branch
        %202 = sbr.rel (%p200) target = $region24
      $region23: #{multihead_attention.4} parent=15 // pred_region
        %p203 = scmp.lt.s32.totalorder %s17, 7
        %s204 = scalar_select %p203, %s17, 7
        %p205 = scmp.lt.s32.totalorder %s19, 0
        %s206 = scalar_select %p205, %s19, 0
        %s207 = sadd.s32 %s206, %s204
        %s208 = sadd.s32 %s207, 8
        %s209 = smul.addr %s208, 8
        %s210 = scalar_lea.vmem %s1, %s209
      $region24: #{multihead_attention.4} parent=15 // pred_fallthru
        _
      // Predicated region
      $region25: #{multihead_attention.4} parent=15 // pred_check
        %p211 = pneg %p107
      $region26: #{multihead_attention.4} parent=15 // pred_check_branch
        %213 = sbr.rel (%p211) target = $region28
      $region27: #{multihead_attention.4} parent=15 // pred_region
        %p214 = scmp.lt.s32.totalorder %s17, 7
        %s215 = scalar_select %p214, %s17, 7
        %p216 = scmp.lt.s32.totalorder %s19, 0
        %s217 = scalar_select %p216, %s19, 0
        %s218 = sadd.s32 %s217, %s215
        %s219 = sadd.s32 %s218, 16
        %s220 = smul.addr %s219, 8
        %s221 = scalar_lea.vmem %s2, %s220
      $region28: #{multihead_attention.4} parent=15 // pred_fallthru
        _
      // Predicated region
      $region29: #{multihead_attention.4} parent=15 // pred_check
        %p222 = pneg %p137
      $region30: #{multihead_attention.4} parent=15 // pred_check_branch
        %224 = sbr.rel (%p222) target = $region32
      $region31: #{multihead_attention.4} parent=15 // pred_region
        %p225 = scmp.lt.s32.totalorder %s17, 7
        %s226 = scalar_select %p225, %s17, 7
        %p227 = scmp.lt.s32.totalorder %s18, 0
        %s228 = scalar_select %p227, %s18, 0
        %p229 = scmp.lt.s32.totalorder %s19, 0
        %s230 = scalar_select %p229, %s19, 0
        %s231 = sadd.s32 %s230, %s228
        %s232 = sadd.s32 %s231, %s226
        %s233 = smul.addr %s232, 8
        %s234 = scalar_lea.vmem %s3, %s233
      $region32: #{multihead_attention.4} parent=15 // pred_fallthru
        _
    $region16: #{multihead_attention.4} parent=5 // pred_fallthru
      _
    %p235 = scmp.le.s32.totalorder 1, %s10
    %p236 = scmp.lt.s32.totalorder %s10, 9
    %p237 = pnand %p235, %p236
    %p238 = pneg %p237
    // Predicated region
    $region33: #{multihead_attention.4} parent=5 // pred_check
      _
    $region34: #{multihead_attention.4} parent=5 // pred_check_branch
      %240 = sbr.rel (%p237) target = $region36
    $region35: #{multihead_attention.4} parent=5 // pred_region
      %s241 = ssub.s32 %s10, 1
      %p242 = scmp.lt.s32.totalorder %s20, 7
      %s243 = scalar_select %p242, %s20, 7
      %p244 = scmp.lt.s32.totalorder %s21, 0
      %s245 = scalar_select %p244, %s21, 0
      %s246 = sadd.s32 %s245, %s243
      %s247 = smul.addr %s246, 8
      %s248 = scalar_lea.vmem %s0, %s247
      %p249 = pneg %p57
      %p250 = pneg %p54
      %p251 = scmp.lt.s32.totalorder %s20, 7
      %s252 = scalar_select %p251, %s20, 7
      %p253 = scmp.lt.s32.totalorder %s22, 0
      %s254 = scalar_select %p253, %s22, 0
      %s255 = sadd.s32 %s254, %s252
      %s256 = sadd.s32 %s255, 8
      %s257 = smul.addr %s256, 8
      %s258 = scalar_lea.vmem %s1, %s257
      %p259 = pneg %p85
      %p260 = pneg %p82
      %p261 = scmp.lt.s32.totalorder %s20, 7
      %s262 = scalar_select %p261, %s20, 7
      %p263 = scmp.lt.s32.totalorder %s22, 0
      %s264 = scalar_select %p263, %s22, 0
      %s265 = sadd.s32 %s264, %s262
      %s266 = sadd.s32 %s265, 16
      %s267 = smul.addr %s266, 8
      %s268 = scalar_lea.vmem %s2, %s267
      %p269 = pneg %p113
      %p270 = pneg %p110
      %p271 = scmp.lt.s32.totalorder %s20, 7
      %s272 = scalar_select %p271, %s20, 7
      %p273 = scmp.lt.s32.totalorder %s21, 0
      %s274 = scalar_select %p273, %s21, 0
      %p275 = scmp.lt.s32.totalorder %s22, 0
      %s276 = scalar_select %p275, %s22, 0
      %s277 = sadd.s32 %s276, %s274
      %s278 = sadd.s32 %s277, %s272
      %s279 = smul.addr %s278, 8
      %s280 = scalar_lea.vmem %s3, %s279
      %p281 = pneg %p143
      %p282 = pneg %p140
      %p283 = pneg %p171
      %p284 = pneg %p168
      %p285 = scmp.lt.s32.totalorder %s20, 7
      %s286 = scalar_select %p285, %s20, 7
      %p287 = scmp.lt.s32.totalorder %s21, 0
      %s288 = scalar_select %p287, %s21, 0
      %s289 = sadd.s32 %s288, %s286
      %s290 = smul.addr %s289, 8
      %s291 = scalar_lea.vmem %s4, %s290
      %p292 = scmp.lt.s32.totalorder %s20, 7
      %s293 = scalar_select %p292, %s20, 7
      %p294 = scmp.lt.s32.totalorder %s21, 0
      %s295 = scalar_select %p294, %s21, 0
      %s296 = sadd.s32 %s295, %s293
      %s297 = smul.addr %s296, 8
      %s298 = scalar_lea.vmem %s0, %s297
      %p299 = scmp.lt.s32.totalorder %s20, 7
      %s300 = scalar_select %p299, %s20, 7
      %p301 = scmp.lt.s32.totalorder %s22, 0
      %s302 = scalar_select %p301, %s22, 0
      %s303 = sadd.s32 %s302, %s300
      %s304 = sadd.s32 %s303, 8
      %s305 = smul.addr %s304, 8
      %s306 = scalar_lea.vmem %s1, %s305
      %p307 = scmp.lt.s32.totalorder %s20, 7
      %s308 = scalar_select %p307, %s20, 7
      %p309 = scmp.lt.s32.totalorder %s22, 0
      %s310 = scalar_select %p309, %s22, 0
      %s311 = sadd.s32 %s310, %s308
      %s312 = sadd.s32 %s311, 16
      %s313 = smul.addr %s312, 8
      %s314 = scalar_lea.vmem %s2, %s313
      %p315 = scmp.lt.s32.totalorder %s20, 7
      %s316 = scalar_select %p315, %s20, 7
      %p317 = scmp.lt.s32.totalorder %s21, 0
      %s318 = scalar_select %p317, %s21, 0
      %p319 = scmp.lt.s32.totalorder %s22, 0
      %s320 = scalar_select %p319, %s22, 0
      %s321 = sadd.s32 %s320, %s318
      %s322 = sadd.s32 %s321, %s316
      %s323 = smul.addr %s322, 8
      %s324 = scalar_lea.vmem %s3, %s323
      %p325 = scmp.lt.s32.totalorder %s20, 7
      %s326 = scalar_select %p325, %s20, 7
      %p327 = scmp.lt.s32.totalorder %s21, 0
      %s328 = scalar_select %p327, %s21, 0
      %s329 = sadd.s32 %s328, %s326
      %s330 = smul.addr %s329, 8
      %s331 = scalar_lea.vmem %s4, %s330
      %p332 = scmp.eq.s32.totalorder %s22, 0
      // Predicated region
      $region37: #{multihead_attention.4} parent=35 // pred_check
        %p333 = pneg %p332
      $region38: #{multihead_attention.4} parent=35 // pred_check_branch
        %335 = sbr.rel (%p333) target = $region40
      $region39: #{multihead_attention.4} parent=35 // pred_region
        %vm336 = vcmask 7168
        %337 = vst.msk [vmem:[#allocation2] sm:$0xff] %vm336, -inf
        %338 = vst.msk [vmem:[#allocation3] sm:$0xff] %vm336, 0.0
        %vm339 = vcmask 64512
        %340 = vst.msk [vmem:[#allocation4] sm:$0xff] %vm339, 0.0
      $region40: #{multihead_attention.4} parent=35 // pred_fallthru
        _
      %v341 = vld [vmem:[%s298] sm:$0xff]
      %v342 = vld [vmem:[%s306] sm:$0xff]
      %v343 = vld [vmem:[%s314] sm:$0xff]
      %v344 = vld [vmem:[%s324] sm:$0xff]
      %vm345 = vcmask 64512
      %v347 = vsel %vm345, %v341, 0
      %v350 = vsel %vm345, %v342, 0
      %352 = vmatprep.subr.mxu0 0.0
      %353 = vmatpush1.xpose.msra.mxu0 %v350
      %354 = vmatprep.subr.mxu0 0.0
      %355 = vmatpush1.xpose.msra.mxu0 0.0
      %356 = vmatprep.subr.mxu0 0.0
      %357 = vmatpush1.xpose.msra.mxu0 0.0
      %358 = vmatprep.subr.mxu0 0.0
      %359 = vmatpush1.xpose.msra.mxu0 0.0
      %360 = vmatprep.subr.mxu0 0.0
      %361 = vmatpush1.xpose.msra.mxu0 0.0
      %362 = vmatprep.subr.mxu0 0.0
      %363 = vmatpush1.xpose.msra.mxu0 0.0
      %364 = vmatprep.subr.mxu0 0.0
      %365 = vmatpush1.xpose.msra.mxu0 0.0
      %366 = vmatprep.subr.mxu0 0.0
      %367 = vmatpush1.xpose.msra.mxu0 0.0
      %368 = vmatprep.subr.mxu0 0.0
      %369 = vmatpush1.xpose.msra.mxu0 0.0
      %370 = vmatprep.subr.mxu0 0.0
      %371 = vmatpush1.xpose.msra.mxu0 0.0
      %372 = vmatprep.subr.mxu0 0.0
      %373 = vmatpush1.xpose.msra.mxu0 0.0
      %374 = vmatprep.subr.mxu0 0.0
      %375 = vmatpush1.xpose.msra.mxu0 0.0
      %376 = vmatprep.subr.mxu0 0.0
      %377 = vmatpush1.xpose.msra.mxu0 0.0
      %378 = vmatprep.subr.mxu0 0.0
      %379 = vmatpush1.xpose.msra.mxu0 0.0
      %380 = vmatprep.subr.mxu0 0.0
      %381 = vmatpush1.xpose.msra.mxu0 0.0
      %382 = vmatprep.subr.mxu0 0.0
      %383 = vmatpush1.xpose.msra.mxu0 0.0
      %384 = vmatprep.subr.mxu0 0.0
      %385 = vmatpush1.xpose.msra.mxu0 0.0
      %386 = vmatprep.subr.mxu0 0.0
      %387 = vmatpush1.xpose.msra.mxu0 0.0
      %388 = vmatprep.subr.mxu0 0.0
      %389 = vmatpush1.xpose.msra.mxu0 0.0
      %390 = vmatprep.subr.mxu0 0.0
      %391 = vmatpush1.xpose.msra.mxu0 0.0
      %392 = vmatprep.subr.mxu0 0.0
      %393 = vmatpush1.xpose.msra.mxu0 0.0
      %394 = vmatprep.subr.mxu0 0.0
      %395 = vmatpush1.xpose.msra.mxu0 0.0
      %396 = vmatprep.subr.mxu0 0.0
      %397 = vmatpush1.xpose.msra.mxu0 0.0
      %398 = vmatprep.subr.mxu0 0.0
      %399 = vmatpush1.xpose.msra.mxu0 0.0
      %400 = vmatprep.subr.mxu0 0.0
      %401 = vmatpush1.xpose.msra.mxu0 0.0
      %402 = vmatprep.subr.mxu0 0.0
      %403 = vmatpush1.xpose.msra.mxu0 0.0
      %404 = vmatprep.subr.mxu0 0.0
      %405 = vmatpush1.xpose.msra.mxu0 0.0
      %406 = vmatprep.subr.mxu0 0.0
      %407 = vmatpush1.xpose.msra.mxu0 0.0
      %408 = vmatprep.subr.mxu0 0.0
      %409 = vmatpush1.xpose.msra.mxu0 0.0
      %410 = vmatprep.subr.mxu0 0.0
      %411 = vmatpush1.xpose.msra.mxu0 0.0
      %412 = vmatprep.subr.mxu0 0.0
      %413 = vmatpush1.xpose.msra.mxu0 0.0
      %414 = vmatprep.subr.mxu0 0.0
      %415 = vmatpush1.xpose.msra.mxu0 0.0
      %416 = vmatprep.mubr.f32.mxu0 0.0
      %417 = vmatmul.mubr.f32.gmra.mrb[0].mxu0 %v347
      %v418 = vpop.f32.mrb[0].mxu0
      %v419 = vadd.f32 %v344, %v418
      %v420 = vpop.f32.mrb[0].mxu0
      %421 = vdwg.mxu0
      %v422 = vld [vmem:[#allocation2] sm:$0xff]
      %v423 = vsel %vm345, %v419, -inf
      %424 = vmax.xlane.f32.xlu0 %v423
      %v425 = vpop.xlane.xlu0 %424
      %v426 = vmax.f32 %v422, %v425
      %v427 = vsub.f32 %v422, %v426
      %v428 = vmul.f32 %v427, 1.442695
      %v429 = vpow.pop %v428
      %431 = vset.pattern.permute.xlu0 0
      %432 = vperm.xlu0 %431, %v426
      %v433 = vpop.permute.xlu0 %432
      %v435 = vsub.f32 %v419, %v433
      %v436 = vmul.f32 %v435, 1.442695
      %v437 = vpow.pop %v436
      %v438 = vld [vmem:[#allocation3] sm:$0xff]
      %v439 = vmul.f32 %v429, %v438
      %v440 = vsel %vm345, %v437, 0.0
      %441 = vadd.xlane.f32.xlu0 %v440
      %v442 = vpop.xlane.xlu0 %441
      %v443 = vadd.f32 %v439, %v442
      %vm444 = vcmask 7168
      %445 = vst.msk [vmem:[#allocation3] sm:$0xff] %vm444, %v443
      %v446 = vld [vmem:[#allocation4] sm:$0xff]
      %448 = vset.pattern.permute.xlu0 0
      %449 = vperm.xlu0 %448, %v429
      %v450 = vpop.permute.xlu0 %449
      %v452 = vmul.f32 %v450, %v446
      %v454 = vsel %vm345, %v437, 0
      %456 = vmatprep.subr.mxu0 0.0
      %457 = vmatpush1.msra.mxu0 %v343
      %458 = vmatprep.subr.mxu0 0.0
      %459 = vmatpush1.msra.mxu0 0.0
      %460 = vmatprep.subr.mxu0 0.0
      %461 = vmatpush1.msra.mxu0 0.0
      %462 = vmatprep.subr.mxu0 0.0
      %463 = vmatpush1.msra.mxu0 0.0
      %464 = vmatprep.subr.mxu0 0.0
      %465 = vmatpush1.msra.mxu0 0.0
      %466 = vmatprep.subr.mxu0 0.0
      %467 = vmatpush1.msra.mxu0 0.0
      %468 = vmatprep.subr.mxu0 0.0
      %469 = vmatpush1.msra.mxu0 0.0
      %470 = vmatprep.subr.mxu0 0.0
      %471 = vmatpush1.msra.mxu0 0.0
      %472 = vmatprep.subr.mxu0 0.0
      %473 = vmatpush1.msra.mxu0 0.0
      %474 = vmatprep.subr.mxu0 0.0
      %475 = vmatpush1.msra.mxu0 0.0
      %476 = vmatprep.subr.mxu0 0.0
      %477 = vmatpush1.msra.mxu0 0.0
      %478 = vmatprep.subr.mxu0 0.0
      %479 = vmatpush1.msra.mxu0 0.0
      %480 = vmatprep.subr.mxu0 0.0
      %481 = vmatpush1.msra.mxu0 0.0
      %482 = vmatprep.subr.mxu0 0.0
      %483 = vmatpush1.msra.mxu0 0.0
      %484 = vmatprep.subr.mxu0 0.0
      %485 = vmatpush1.msra.mxu0 0.0
      %486 = vmatprep.subr.mxu0 0.0
      %487 = vmatpush1.msra.mxu0 0.0
      %488 = vmatprep.subr.mxu0 0.0
      %489 = vmatpush1.msra.mxu0 0.0
      %490 = vmatprep.subr.mxu0 0.0
      %491 = vmatpush1.msra.mxu0 0.0
      %492 = vmatprep.subr.mxu0 0.0
      %493 = vmatpush1.msra.mxu0 0.0
      %494 = vmatprep.subr.mxu0 0.0
      %495 = vmatpush1.msra.mxu0 0.0
      %496 = vmatprep.subr.mxu0 0.0
      %497 = vmatpush1.msra.mxu0 0.0
      %498 = vmatprep.subr.mxu0 0.0
      %499 = vmatpush1.msra.mxu0 0.0
      %500 = vmatprep.subr.mxu0 0.0
      %501 = vmatpush1.msra.mxu0 0.0
      %502 = vmatprep.subr.mxu0 0.0
      %503 = vmatpush1.msra.mxu0 0.0
      %504 = vmatprep.subr.mxu0 0.0
      %505 = vmatpush1.msra.mxu0 0.0
      %506 = vmatprep.subr.mxu0 0.0
      %507 = vmatpush1.msra.mxu0 0.0
      %508 = vmatprep.subr.mxu0 0.0
      %509 = vmatpush1.msra.mxu0 0.0
      %510 = vmatprep.subr.mxu0 0.0
      %511 = vmatpush1.msra.mxu0 0.0
      %512 = vmatprep.subr.mxu0 0.0
      %513 = vmatpush1.msra.mxu0 0.0
      %514 = vmatprep.subr.mxu0 0.0
      %515 = vmatpush1.msra.mxu0 0.0
      %516 = vmatprep.subr.mxu0 0.0
      %517 = vmatpush1.msra.mxu0 0.0
      %518 = vmatprep.subr.mxu0 0.0
      %519 = vmatpush1.msra.mxu0 0.0
      %520 = vmatprep.mubr.f32.mxu0 0.0
      %521 = vmatmul.mubr.f32.gmra.mrb[0].mxu0 %v454
      %v522 = vpop.f32.mrb[0].mxu0
      %v523 = vadd.f32 0.0, %v522
      %v524 = vpop.f32.mrb[0].mxu0
      %525 = vdwg.mxu0
      %v526 = vadd.f32 %v452, %v523
      %527 = vst.msk [vmem:[#allocation4] sm:$0xff] %vm345, %v526
      %528 = vst.msk [vmem:[#allocation2] sm:$0xff] %vm444, %v426
      // Predicated region
      $region41: #{multihead_attention.4} parent=35 // pred_check
        %p529 = pneg %p332
      $region42: #{multihead_attention.4} parent=35 // pred_check_branch
        %531 = sbr.rel (%p529) target = $region44
      $region43: #{multihead_attention.4} parent=35 // pred_region
        %v532 = vld [vmem:[#allocation4] sm:$0xff]
        %v533 = vld [vmem:[#allocation3] sm:$0xff]
        %v534 = vrcp.pop %v533
        %536 = vset.pattern.permute.xlu0 0
        %537 = vperm.xlu0 %536, %v534
        %v538 = vpop.permute.xlu0 %537
        %v540 = vmul.f32 %v532, %v538
        %541 = vst.msk [vmem:[%s331] sm:$0xff] %vm345, %v540
      $region44: #{multihead_attention.4} parent=35 // pred_fallthru
        _
      %p542 = scmp.lt.s32.totalorder %s20, 7
      %s543 = scalar_select %p542, %s20, 7
      %p544 = scmp.lt.s32.totalorder %s21, 0
      %s545 = scalar_select %p544, %s21, 0
      %s546 = sadd.s32 %s545, %s543
      %s547 = smul.addr %s546, 8
      %s548 = scalar_lea.vmem %s4, %s547
      // Predicated region
      $region45: #{multihead_attention.4} parent=35 // pred_check
        %p549 = pneg %p168
      $region46: #{multihead_attention.4} parent=35 // pred_check_branch
        %551 = sbr.rel (%p549) target = $region48
      $region47: #{multihead_attention.4} parent=35 // pred_region
        _
      $region48: #{multihead_attention.4} parent=35 // pred_fallthru
        _
    $region36: #{multihead_attention.4} parent=5 // pred_fallthru
      _
    %p552 = scmp.le.s32.totalorder 2, %s10
    // Predicated region
    $region49: #{multihead_attention.4} parent=5 // pred_check
      %p553 = pneg %p552
    $region50: #{multihead_attention.4} parent=5 // pred_check_branch
      %555 = sbr.rel (%p553) target = $region52
    $region51: #{multihead_attention.4} parent=5 // pred_region
      %s556 = ssub.s32 %s10, 2
      // Predicated region
      $region53: #{multihead_attention.4} parent=51 // pred_check
        %p557 = pneg %p174
      $region54: #{multihead_attention.4} parent=51 // pred_check_branch
        %559 = sbr.rel (%p557) target = $region56
      $region55: #{multihead_attention.4} parent=51 // pred_region
        %p560 = scmp.lt.s32.totalorder %s23, 7
        %s561 = scalar_select %p560, %s23, 7
        %p562 = scmp.lt.s32.totalorder %s24, 0
        %s563 = scalar_select %p562, %s24, 0
        %s564 = sadd.s32 %s563, %s561
        %s565 = smul.addr %s564, 8
        %s566 = scalar_lea.vmem %s4, %s565
      $region56: #{multihead_attention.4} parent=51 // pred_fallthru
        _
    $region52: #{multihead_attention.4} parent=5 // pred_fallthru
      _
  $region6: #{multihead_attention.4} parent=0 // loop_footer
    %s14 = sadd.s32 1, %s10
  $region7: #{multihead_attention.4} parent=0 // loop_footer_branch
    %9 = sbr.rel target = $region3
  $region8: #{multihead_attention.4} parent=0 // loop_exit
    _

// kernel: multihead_attention.5
$region0: #{multihead_attention.5}
  #allocation0 [shape = 'u32[]', space=smem, size = 0x4, offset = 0x4, fixed_abs, tag = 'smem constant byte address 0x4 - core index']
  #allocation1 [shape = 'u32[144,128]{1,0:T(1,128)}', space=vmem, size = 0x12000, scoped, tag = 'internal scratch']
  #allocation2 [shape = 'f32[16,32]{1,0:T(8,128)}', space=vmem, size = 0x2000, scoped, tag = 'scratch operand']
  %s0 = inlined_call_operand.vmem [shape: f32[16,32], index: 0, kind: input, shape index: {}]
  %s1 = inlined_call_operand.vmem [shape: f32[1,32], index: 1, kind: input, shape index: {}]
  %s2 = inlined_call_operand.vmem [shape: f32[1,32], index: 2, kind: input, shape index: {}]
  %s3 = inlined_call_operand.vmem [shape: f32[32,32], index: 3, kind: input, shape index: {}]
  %s4 = inlined_call_operand.vmem [shape: f32[1,32], index: 4, kind: input, shape index: {}]
  %s5 = inlined_call_operand.hbm [shape: f32[16,32], index: 5, kind: output, shape index: {}]
  %s6 = sld [smem:[#allocation0]]
  $region34: #{multihead_attention.5} parent=0
    _
  %s8 = ssub.s32 1, %s6
  %s9 = scalar_select 0, %s8, %s6
  $region1: #{multihead_attention.5} parent=0
    #allocation3 [shape = 'u8[8192]{0}', space=vmem, size = 0x2000, scoped, tag = 'output window, operand 0, single buffered']
    #allocation4 [shape = 's32[1]{0}', space=sflag, size = 0x4, scoped, tag = 'scoped memory for multihead_attention.5']
    %10 = vsyncpa [#allocation4], 0
    // Predicated region
    $region2: #{multihead_attention.5} parent=1 // pred_check
      _
    $region3: #{multihead_attention.5} parent=1 // pred_check_branch
      %12 = sbr.rel (0) target = $region5
    $region4: #{multihead_attention.5} parent=1 // pred_region
      _
    $region5: #{multihead_attention.5} parent=1 // pred_fallthru
      _
    // Predicated region
    $region6: #{multihead_attention.5} parent=1 // pred_check
      _
    $region7: #{multihead_attention.5} parent=1 // pred_check_branch
      %14 = sbr.rel (0) target = $region9
    $region8: #{multihead_attention.5} parent=1 // pred_region
      _
    $region9: #{multihead_attention.5} parent=1 // pred_fallthru
      _
    // Predicated region
    $region10: #{multihead_attention.5} parent=1 // pred_check
      _
    $region11: #{multihead_attention.5} parent=1 // pred_check_branch
      %16 = sbr.rel (0) target = $region13
    $region12: #{multihead_attention.5} parent=1 // pred_region
      _
    $region13: #{multihead_attention.5} parent=1 // pred_fallthru
      _
    // Predicated region
    $region14: #{multihead_attention.5} parent=1 // pred_check
      _
    $region15: #{multihead_attention.5} parent=1 // pred_check_branch
      %18 = sbr.rel (0) target = $region17
    $region16: #{multihead_attention.5} parent=1 // pred_region
      _
    $region17: #{multihead_attention.5} parent=1 // pred_fallthru
      _
    // Predicated region
    $region18: #{multihead_attention.5} parent=1 // pred_check
      _
    $region19: #{multihead_attention.5} parent=1 // pred_check_branch
      %20 = sbr.rel (0) target = $region21
    $region20: #{multihead_attention.5} parent=1 // pred_region
      _
    $region21: #{multihead_attention.5} parent=1 // pred_fallthru
      _
    %p21 = scmp.eq.s32.totalorder 0, 0
    // Predicated region
    $region22: #{multihead_attention.5} parent=1 // pred_check
      %p22 = pneg %p21
    $region23: #{multihead_attention.5} parent=1 // pred_check_branch
      %24 = sbr.rel (%p22) target = $region25
    $region24: #{multihead_attention.5} parent=1 // pred_region
      %v25 = vld [vmem:[%s0] sm:$0xff]
      %v26 = vld [vmem:[%s0 + $0x8] sm:$0xff]
      %vm27 = vcmask 261120
      %v28 = vsel %vm27, %v25, 0.0
      %29 = vadd.xlane.f32.xlu0 %v28
      %v30 = vpop.xlane.xlu0 %29
      %v31 = vsel %vm27, %v26, 0.0
      %32 = vadd.xlane.f32.xlu0 %v31
      %v33 = vpop.xlane.xlu0 %32
      %v34 = vrcp.pop 32.0
      %v35 = vmul.f32 %v30, %v34
      %v36 = vmul.f32 %v33, %v34
      %v37 = vsub.f32 %v25, %v35
      %v38 = vsub.f32 %v26, %v36
      %v39 = vmul.f32 %v37, %v37
      %v40 = vmul.f32 %v38, %v38
      %v41 = vsel %vm27, %v39, 0.0
      %42 = vadd.xlane.f32.xlu0 %v41
      %v43 = vpop.xlane.xlu0 %42
      %v44 = vsel %vm27, %v40, 0.0
      %45 = vadd.xlane.f32.xlu0 %v44
      %v46 = vpop.xlane.xlu0 %45
      %v47 = vmul.f32 %v43, %v34
      %v48 = vmul.f32 %v46, %v34
      %v49 = vadd.f32 %v47, 1e-05
      %v50 = vadd.f32 %v48, 1e-05
      %v51 = vrsqrt.pop %v49
      %v52 = vrsqrt.pop %v50
      %v53 = vmul.f32 %v37, %v51
      %v54 = vmul.f32 %v38, %v52
      %v55 = vld [vmem:[%s1] sm:$0x1]
      %v57 = vlaneseq
      %v58 = vshrl.u32 %v57, 7
      %v59 = vsub.s32 0, %v58
      %v60 = vrot.slane %v55, %v59
      %v62 = vmul.f32 %v53, %v60
      %v63 = vmul.f32 %v54, %v60
      %v64 = vld [vmem:[%s2] sm:$0x1]
      %v66 = vlaneseq
      %v67 = vshrl.u32 %v66, 7
      %v68 = vsub.s32 0, %v67
      %v69 = vrot.slane %v64, %v68
      %v71 = vadd.f32 %v62, %v69
      %v72 = vadd.f32 %v63, %v69
      %73 = vst.msk [vmem:[#allocation2] sm:$0xff] %vm27, %v71
      %74 = vst.msk [vmem:[#allocation2 + $0x8] sm:$0xff] %vm27, %v72
    $region25: #{multihead_attention.5} parent=1 // pred_fallthru
      _
    %v75 = vld [vmem:[#allocation2] sm:$0xff]
    %v76 = vld [vmem:[#allocation2 + $0x8] sm:$0xff]
    %v77 = vld [vmem:[%s3] sm:$0xff]
    %v78 = vld [vmem:[%s3 + $0x8] sm:$0xff]
    %v79 = vld [vmem:[%s3 + $0x10] sm:$0xff]
    %v80 = vld [vmem:[%s3 + $0x18] sm:$0xff]
    %v81 = vld [vmem:[%s4] sm:$0x1]
    %v83 = vlaneseq
    %v84 = vshrl.u32 %v83, 7
    %v85 = vsub.s32 0, %v84
    %v86 = vrot.slane %v81, %v85
    %vm88 = vcmask 261120
    %v90 = vsel %vm88, %v75, 0
    %v93 = vsel %vm88, %v76, 0
    %95 = vmatprep.subr.mxu0 0.0
    %96 = vmatpush1.msra.mxu0 %v77
    %97 = vmatprep.subr.mxu0 0.0
    %98 = vmatpush1.msra.mxu0 %v78
    %99 = vmatprep.subr.mxu0 0.0
    %100 = vmatpush1.msra.mxu0 %v79
    %101 = vmatprep.subr.mxu0 0.0
    %102 = vmatpush1.msra.mxu0 %v80
    %103 = vmatprep.subr.mxu0 0.0
    %104 = vmatpush1.msra.mxu0 0.0
    %105 = vmatprep.subr.mxu0 0.0
    %106 = vmatpush1.msra.mxu0 0.0
    %107 = vmatprep.subr.mxu0 0.0
    %108 = vmatpush1.msra.mxu0 0.0
    %109 = vmatprep.subr.mxu0 0.0
    %110 = vmatpush1.msra.mxu0 0.0
    %111 = vmatprep.subr.mxu0 0.0
    %112 = vmatpush1.msra.mxu0 0.0
    %113 = vmatprep.subr.mxu0 0.0
    %114 = vmatpush1.msra.mxu0 0.0
    %115 = vmatprep.subr.mxu0 0.0
    %116 = vmatpush1.msra.mxu0 0.0
    %117 = vmatprep.subr.mxu0 0.0
    %118 = vmatpush1.msra.mxu0 0.0
    %119 = vmatprep.subr.mxu0 0.0
    %120 = vmatpush1.msra.mxu0 0.0
    %121 = vmatprep.subr.mxu0 0.0
    %122 = vmatpush1.msra.mxu0 0.0
    %123 = vmatprep.subr.mxu0 0.0
    %124 = vmatpush1.msra.mxu0 0.0
    %125 = vmatprep.subr.mxu0 0.0
    %126 = vmatpush1.msra.mxu0 0.0
    %127 = vmatprep.subr.mxu0 0.0
    %128 = vmatpush1.msra.mxu0 0.0
    %129 = vmatprep.subr.mxu0 0.0
    %130 = vmatpush1.msra.mxu0 0.0
    %131 = vmatprep.subr.mxu0 0.0
    %132 = vmatpush1.msra.mxu0 0.0
    %133 = vmatprep.subr.mxu0 0.0
    %134 = vmatpush1.msra.mxu0 0.0
    %135 = vmatprep.subr.mxu0 0.0
    %136 = vmatpush1.msra.mxu0 0.0
    %137 = vmatprep.subr.mxu0 0.0
    %138 = vmatpush1.msra.mxu0 0.0
    %139 = vmatprep.subr.mxu0 0.0
    %140 = vmatpush1.msra.mxu0 0.0
    %141 = vmatprep.subr.mxu0 0.0
    %142 = vmatpush1.msra.mxu0 0.0
    %143 = vmatprep.subr.mxu0 0.0
    %144 = vmatpush1.msra.mxu0 0.0
    %145 = vmatprep.subr.mxu0 0.0
    %146 = vmatpush1.msra.mxu0 0.0
    %147 = vmatprep.subr.mxu0 0.0
    %148 = vmatpush1.msra.mxu0 0.0
    %149 = vmatprep.subr.mxu0 0.0
    %150 = vmatpush1.msra.mxu0 0.0
    %151 = vmatprep.subr.mxu0 0.0
    %152 = vmatpush1.msra.mxu0 0.0
    %153 = vmatprep.subr.mxu0 0.0
    %154 = vmatpush1.msra.mxu0 0.0
    %155 = vmatprep.subr.mxu0 0.0
    %156 = vmatpush1.msra.mxu0 0.0
    %157 = vmatprep.subr.mxu0 0.0
    %158 = vmatpush1.msra.mxu0 0.0
    %159 = vmatprep.mubr.f32.mxu0 0.0
    %160 = vmatmul.mubr.f32.gmra.mrb[0].mxu0 %v90
    %v161 = vpop.f32.mrb[0].mxu0
    %v162 = vadd.f32 %v86, %v161
    %v163 = vpop.f32.mrb[0].mxu0
    %164 = vmatprep.mubr.f32.mxu0 0.0
    %165 = vmatmul.mubr.f32.gmra.mrb[0].mxu0 %v93
    %v166 = vpop.f32.mrb[0].mxu0
    %v167 = vadd.f32 %v86, %v166
    %v168 = vpop.f32.mrb[0].mxu0
    %169 = vdwg.mxu0
    %170 = vst.msk [vmem:[#allocation3] sm:$0xff] %vm88, %v162
    %171 = vst.msk [vmem:[#allocation3 + $0x8] sm:$0xff] %vm88, %v167
    // Predicated region
    $region26: #{multihead_attention.5} parent=1 // pred_check
      _
    $region27: #{multihead_attention.5} parent=1 // pred_check_branch
      %173 = sbr.rel (0) target = $region29
    $region28: #{multihead_attention.5} parent=1 // pred_region
      %s175 = ssub.s32 256, 256
      %176 = vsyncadd [#allocation4], %s175
      %s177 = sshll.u32 [#allocation3], 4
      %s178 = int_to_ptr.vmem [resolvable:$true] %s177
      %183 = dma.vmem_to_hbm [thread:$0]  %s178, 256, %s5, [#allocation4], 128, 128, 8
    $region29: #{multihead_attention.5} parent=1 // pred_fallthru
      _
    // Predicated region
    $region30: #{multihead_attention.5} parent=1 // pred_check
      _
    $region31: #{multihead_attention.5} parent=1 // pred_check_branch
      %185 = sbr.rel (0) target = $region33
    $region32: #{multihead_attention.5} parent=1 // pred_region
      %186 = dma.done [#allocation4], 256
    $region33: #{multihead_attention.5} parent=1 // pred_fallthru
      _
    %187 = vsyncpa [#allocation4], 1

</llo_original>
